<compile_context>
chip_gen: v7x
topology: tpu7x:2x2x1
jax: 0.10.0
libtpu: 0.0.40
codegen_flags: <defaults>
</compile_context>

<pallas_src>
import functools

import jax
import jax.numpy as jnp
from jax.experimental import pallas as pl
from jax.experimental.pallas import tpu as pltpu


def _round_up(n: int, m: int) -> int:
    return ((n + m - 1) // m) * m


def _default_epilogue_dtype():
    """bf16 epilogue on v6e/v7x (native bf16 VPU); f32 elsewhere (v5e, ...)."""
    try:
        kind = jax.devices()[0].device_kind.lower()
    except Exception:
        return jnp.float32
    if "v6" in kind or "v7" in kind:
        return jnp.bfloat16
    return jnp.float32


def mlp_kernel(x_ref, w1_ref, b1_ref, w2_ref, b2_ref, o_ref, *, num_classes):
    # x_ref : (TB, D_in)   f32      VMEM batch tile (cast to bf16 in-register)
    # w1_ref: (D_in, Hp)   bf16     VMEM resident, single-buffered
    # b1_ref: (1, Hp)      bf16/f32 VMEM resident (epilogue dtype)
    # w2_ref: (Hp, Cp)     bf16     VMEM resident, Cp = round_up(C, 128)
    # b2_ref: (1, C)       f32      VMEM resident
    # o_ref : (TB, C)      f32      VMEM
    x = x_ref[...].astype(jnp.bfloat16)

    # Hidden layer: bf16 MXU matmul, f32 accumulation.
    h = jnp.dot(x, w1_ref[...], preferred_element_type=jnp.float32)
    # Bias + ReLU epilogue in b1's dtype (bf16 on v6e/v7x, f32 on v5e).
    h = jnp.maximum(h.astype(b1_ref.dtype) + b1_ref[...], 0)

    # Dropout is identity at inference time.
    # TODO(synk): training-mode dropout would use pltpu.prng_seed +
    # pltpu.stateful_bernoulli on the hidden activations.

    # Output layer: lane-dense matmul against the padded w2; store only the
    # first num_classes columns so the HBM writeback stays narrow.
    out = jnp.dot(h.astype(jnp.bfloat16), w2_ref[...],
                  preferred_element_type=jnp.float32)
    o_ref[...] = (out[:, :num_classes] + b2_ref[...]).astype(o_ref.dtype)


def prepare_params(w1, b1, w2, b2, *, epilogue_dtype=None):
    """One-time weight preprocessing (pad + cast), hoisted out of the forward.

    w1: (D_in, H), b1: (1, H) or (H,), w2: (H, C), b2: (1, C) or (C,).
    Weights are stored transposed vs. torch.nn.Linear so the kernel computes
    plain row-major matmuls.
    """
    if epilogue_dtype is None:
        epilogue_dtype = _default_epilogue_dtype()
    D_in, H = w1.shape
    C = w2.shape[1]
    Hp = _round_up(H, 128)
    Cp = _round_up(C, 128)
    w1p = jnp.zeros((D_in, Hp), jnp.bfloat16).at[:, :H].set(w1.astype(jnp.bfloat16))
    b1p = jnp.zeros((1, Hp), epilogue_dtype).at[:, :H].set(
        jnp.reshape(b1, (1, H)).astype(epilogue_dtype))
    w2p = jnp.zeros((Hp, Cp), jnp.bfloat16).at[:H, :C].set(w2.astype(jnp.bfloat16))
    b2p = jnp.reshape(b2, (1, C)).astype(jnp.float32)
    return w1p, b1p, w2p, b2p


def _pick_batch_tile(B: int, block_b: int) -> int:
    """Batch tile: multiple of 16, <= block_b, >=2 grid steps when possible."""
    Bp16 = _round_up(max(B, 1), 16)
    tb = min(_round_up(block_b, 16), Bp16)
    if Bp16 >= 32 and Bp16 <= tb:
        # Split in two so both TensorCores get work on v7x (parallel axis).
        tb = _round_up((Bp16 + 1) // 2, 16)
    return max(tb, 16)


def mlp_classifier_forward(x, params, *, block_b: int = 256,
                           single_buffer_weights: bool = True):
    """x: (B, D_in) f32; params from prepare_params().  Returns (B, C) f32.

    Computes ReLU(x @ w1 + b1) @ w2 + b2 (dropout = identity).
    """
    w1p, b1p, w2p, b2p = params
    B, D_in = x.shape
    Hp = w1p.shape[1]
    Cp = w2p.shape[1]
    C = b2p.shape[1]
    assert w1p.shape[0] == D_in

    TB = _pick_batch_tile(B, block_b)
    Bp = _round_up(B, TB)
    xb = x if Bp == B else jnp.pad(x, ((0, Bp - B), (0, 0)))

    grid = (Bp // TB,)

    x_bytes = jnp.dtype(x.dtype).itemsize
    b1_bytes = jnp.dtype(b1p.dtype).itemsize
    # Rough VMEM need: double-buffered x/out tiles, single-buffered weights,
    # plus headroom for the (TB, Hp)/(TB, Cp) intermediates.
    vmem_need = (2 * TB * D_in * x_bytes
                 + w1p.size * 2 + b1p.size * b1_bytes
                 + w2p.size * 2 + b2p.size * 4
                 + 2 * TB * C * 4
                 + 2 * TB * (Hp + Cp) * 4)
    vmem_limit = int(min(48 * 1024 * 1024, max(8 * 1024 * 1024, 2 * vmem_need)))

    flops = 2 * Bp * (D_in * Hp + Hp * Cp)
    bytes_accessed = (xb.size * x_bytes + w1p.size * 2 + w2p.size * 2
                      + b1p.size * b1_bytes + b2p.size * 4 + Bp * C * 4)

    # Constant-index_map blocks do not need double buffers.
    resident = (dict(pipeline_mode=pl.Buffered(buffer_count=1))
                if single_buffer_weights else {})

    out = pl.pallas_call(
        functools.partial(mlp_kernel, num_classes=C),
        out_shape=jax.ShapeDtypeStruct((Bp, C), jnp.float32),
        grid_spec=pl.GridSpec(
            grid=grid,
            in_specs=[
                pl.BlockSpec((TB, D_in), lambda i: (i, 0)),               # x
                pl.BlockSpec((D_in, Hp), lambda i: (0, 0), **resident),   # w1
                pl.BlockSpec((1, Hp), lambda i: (0, 0), **resident),      # b1
                pl.BlockSpec((Hp, Cp), lambda i: (0, 0), **resident),     # w2
                pl.BlockSpec((1, C), lambda i: (0, 0), **resident),       # b2
            ],
            out_specs=pl.BlockSpec((TB, C), lambda i: (i, 0)),
        ),
        compiler_params=pltpu.CompilerParams(
            # Independent batch tiles -> parallel (2 TCs on v7x).
            dimension_semantics=("parallel",),
            vmem_limit_bytes=vmem_limit,
        ),
        cost_estimate=pl.CostEstimate(
            flops=flops, transcendentals=0, bytes_accessed=bytes_accessed),
    )(xb, w1p, b1p, w2p, b2p)

    return out if Bp == B else out[:B]


def init_params(key, input_dim, hidden_dim, num_classes):
    """Deterministic init mimicking nn.Linear default U(-1/sqrt(fan_in), 1/sqrt(fan_in))."""
    k1, k2, k3, k4 = jax.random.split(key, 4)
    lim1 = 1.0 / jnp.sqrt(jnp.float32(input_dim))
    lim2 = 1.0 / jnp.sqrt(jnp.float32(hidden_dim))
    w1 = jax.random.uniform(k1, (input_dim, hidden_dim), jnp.float32, -lim1, lim1)
    b1 = jax.random.uniform(k2, (1, hidden_dim), jnp.float32, -lim1, lim1)
    w2 = jax.random.uniform(k3, (hidden_dim, num_classes), jnp.float32, -lim2, lim2)
    b2 = jax.random.uniform(k4, (1, num_classes), jnp.float32, -lim2, lim2)
    return w1, b1, w2, b2


if __name__ == "__main__":
    key = jax.random.PRNGKey(0)
    kx, kp = jax.random.split(key)

    batch, input_dim, hidden_dim, num_classes = 8, 32, 64, 1
    x = jax.random.normal(kx, (batch, input_dim), jnp.float32)
    w1, b1, w2, b2 = init_params(kp, input_dim, hidden_dim, num_classes)

    # One-time weight preprocessing (pad + bf16 cast) hoisted out of the
    # per-call path.
    params = prepare_params(w1, b1, w2, b2)

    fwd = jax.jit(functools.partial(mlp_classifier_forward, block_b=256))
    try:
        out = jax.block_until_ready(fwd(x, params))
    except Exception:
        # Narrow fallback: if this jax build rejects single-buffered resident
        # weights (pl.Buffered(1)), retry with default double-buffering.
        fwd = jax.jit(functools.partial(mlp_classifier_forward, block_b=256,
                                        single_buffer_weights=False))
        out = jax.block_until_ready(fwd(x, params))

    # Reference (full-f32 plain JAX).  bf16 MXU operands in the kernel ->
    # loosened tolerance per the bf16 mantissa (~3 decimal digits).
    ref = jnp.maximum(x @ w1 + b1, 0.0) @ w2 + b2
    assert out.shape == (batch, num_classes)
    assert jnp.allclose(out, ref, atol=3e-2, rtol=3e-2), (
        f"max abs err {jnp.max(jnp.abs(out - ref))}")

    print("KERNEL_OK")
</pallas_src>

<mosaic_0001>
module attributes {stable_mosaic.version = 11 : i64} {
  func.func @mlp_kernel(%arg0: i32, %arg1: memref<16x32xf32, #tpu.memory_space<vmem>>, %arg2: memref<32x128xbf16, #tpu.memory_space<vmem>>, %arg3: memref<1x128xf32, #tpu.memory_space<vmem>>, %arg4: memref<128x128xbf16, #tpu.memory_space<vmem>>, %arg5: memref<1x1xf32, #tpu.memory_space<vmem>>, %arg6: memref<16x1xf32, #tpu.memory_space<vmem>>) attributes {dimension_semantics = [#tpu.dimension_semantics<parallel>], iteration_bounds = array<i64: 1>, scalar_prefetch = 0 : i64, scratch_operands = 0 : i64, tpu.core_type = #tpu.core_type<tc>, window_params = [{transform_indices = @transform_0, window_bounds = array<i64: 16, 32>}, {pipeline_mode = #tpu.pipeline_mode<synchronous>, transform_indices = @transform_1, window_bounds = array<i64: 32, 128>}, {pipeline_mode = #tpu.pipeline_mode<synchronous>, transform_indices = @transform_2, window_bounds = array<i64: 1, 128>}, {pipeline_mode = #tpu.pipeline_mode<synchronous>, transform_indices = @transform_3, window_bounds = array<i64: 128, 128>}, {pipeline_mode = #tpu.pipeline_mode<synchronous>, transform_indices = @transform_4, window_bounds = array<i64: 1, 1>}, {transform_indices = @transform_5, window_bounds = array<i64: 16, 1>}]} {
    %c0 = arith.constant 0 : index
    %c0_0 = arith.constant 0 : index
    %0 = vector.load %arg1[%c0, %c0_0] : memref<16x32xf32, #tpu.memory_space<vmem>>, vector<16x32xf32>
    %1 = arith.truncf %0 : vector<16x32xf32> to vector<16x32xbf16>
    %c0_1 = arith.constant 0 : index
    %c0_2 = arith.constant 0 : index
    %2 = vector.load %arg2[%c0_1, %c0_2] : memref<32x128xbf16, #tpu.memory_space<vmem>>, vector<32x128xbf16>
    %cst = arith.constant dense<0.000000e+00> : vector<16x128xf32>
    %3 = tpu.matmul %1, %2, %cst {dimension_numbers = #tpu.dot_dimension_numbers<[1], [0], [0], [1], [0, 0, 1, 1], [], []>} : vector<16x32xbf16>, vector<32x128xbf16>, vector<16x128xf32> -> vector<16x128xf32>
    %c0_3 = arith.constant 0 : index
    %c0_4 = arith.constant 0 : index
    %4 = vector.load %arg3[%c0_3, %c0_4] : memref<1x128xf32, #tpu.memory_space<vmem>>, vector<1x128xf32>
    %5 = vector.broadcast %4 : vector<1x128xf32> to vector<16x128xf32>
    %6 = arith.addf %3, %5 : vector<16x128xf32>
    %cst_5 = arith.constant 0.000000e+00 : f32
    %7 = vector.broadcast %cst_5 : f32 to vector<16x128xf32>
    %8 = arith.maximumf %6, %7 : vector<16x128xf32>
    %9 = arith.truncf %8 : vector<16x128xf32> to vector<16x128xbf16>
    %c0_6 = arith.constant 0 : index
    %c0_7 = arith.constant 0 : index
    %10 = vector.load %arg4[%c0_6, %c0_7] : memref<128x128xbf16, #tpu.memory_space<vmem>>, vector<128x128xbf16>
    %cst_8 = arith.constant dense<0.000000e+00> : vector<16x128xf32>
    %11 = tpu.matmul %9, %10, %cst_8 {dimension_numbers = #tpu.dot_dimension_numbers<[1], [0], [0], [1], [0, 0, 1, 1], [], []>} : vector<16x128xbf16>, vector<128x128xbf16>, vector<16x128xf32> -> vector<16x128xf32>
    %12 = vector.extract_strided_slice %11 {offsets = [0, 0], sizes = [16, 1], strides = [1, 1]} : vector<16x128xf32> to vector<16x1xf32>
    %c0_9 = arith.constant 0 : index
    %c0_10 = arith.constant 0 : index
    %13 = vector.load %arg5[%c0_9, %c0_10] : memref<1x1xf32, #tpu.memory_space<vmem>>, vector<1x1xf32>
    %14 = vector.broadcast %13 : vector<1x1xf32> to vector<16x1xf32>
    %15 = arith.addf %12, %14 : vector<16x1xf32>
    %c0_11 = arith.constant 0 : index
    %c0_12 = arith.constant 0 : index
    %16 = vector.load %arg6[%c0_11, %c0_12] : memref<16x1xf32, #tpu.memory_space<vmem>>, vector<16x1xf32>
    tpu.vector_store %arg6[%c0_11, %c0_12], %15 {strides = array<i32>} : memref<16x1xf32, #tpu.memory_space<vmem>>, vector<16x1xf32>,
    return
  }
  func.func @transform_0(%arg0: i32) -> (i32, i32) {
    %c0_i32 = arith.constant 0 : i32
    %c0_i32_0 = arith.constant 0 : i32
    return %arg0, %c0_i32 : i32, i32
  }
  func.func @transform_1(%arg0: i32) -> (i32, i32) {
    %c0_i32 = arith.constant 0 : i32
    %c0_i32_0 = arith.constant 0 : i32
    %c0_i32_1 = arith.constant 0 : i32
    return %c0_i32, %c0_i32_0 : i32, i32
  }
  func.func @transform_2(%arg0: i32) -> (i32, i32) {
    %c0_i32 = arith.constant 0 : i32
    %c0_i32_0 = arith.constant 0 : i32
    %c0_i32_1 = arith.constant 0 : i32
    return %c0_i32, %c0_i32_0 : i32, i32
  }
  func.func @transform_3(%arg0: i32) -> (i32, i32) {
    %c0_i32 = arith.constant 0 : i32
    %c0_i32_0 = arith.constant 0 : i32
    %c0_i32_1 = arith.constant 0 : i32
    return %c0_i32, %c0_i32_0 : i32, i32
  }
  func.func @transform_4(%arg0: i32) -> (i32, i32) {
    %c0_i32 = arith.constant 0 : i32
    %c0_i32_0 = arith.constant 0 : i32
    %c0_i32_1 = arith.constant 0 : i32
    return %c0_i32, %c0_i32_0 : i32, i32
  }
  func.func @transform_5(%arg0: i32) -> (i32, i32) {
    %c0_i32 = arith.constant 0 : i32
    %c0_i32_0 = arith.constant 0 : i32
    return %arg0, %c0_i32 : i32, i32
  }
}

module attributes {stable_mosaic.version = 11 : i64} {
  func.func @mlp_kernel(%arg0: i32, %arg1: memref<16x32xf32, #tpu.memory_space<vmem>>, %arg2: memref<32x128xbf16, #tpu.memory_space<vmem>>, %arg3: memref<1x128xf32, #tpu.memory_space<vmem>>, %arg4: memref<128x128xbf16, #tpu.memory_space<vmem>>, %arg5: memref<1x1xf32, #tpu.memory_space<vmem>>, %arg6: memref<16x1xf32, #tpu.memory_space<vmem>>) attributes {dimension_semantics = [#tpu.dimension_semantics<parallel>], iteration_bounds = array<i64: 1>, scalar_prefetch = 0 : i64, scratch_operands = 0 : i64, tpu.core_type = #tpu.core_type<tc>, window_params = [{transform_indices = @transform_0, window_bounds = array<i64: 16, 32>}, {pipeline_mode = #tpu.pipeline_mode<synchronous>, transform_indices = @transform_1, window_bounds = array<i64: 32, 128>}, {pipeline_mode = #tpu.pipeline_mode<synchronous>, transform_indices = @transform_2, window_bounds = array<i64: 1, 128>}, {pipeline_mode = #tpu.pipeline_mode<synchronous>, transform_indices = @transform_3, window_bounds = array<i64: 128, 128>}, {pipeline_mode = #tpu.pipeline_mode<synchronous>, transform_indices = @transform_4, window_bounds = array<i64: 1, 1>}, {transform_indices = @transform_5, window_bounds = array<i64: 16, 1>}]} {
    %c0 = arith.constant 0 : index
    %c0_0 = arith.constant 0 : index
    %0 = vector.load %arg1[%c0, %c0_0] : memref<16x32xf32, #tpu.memory_space<vmem>>, vector<16x32xf32>
    %1 = arith.truncf %0 : vector<16x32xf32> to vector<16x32xbf16>
    %c0_1 = arith.constant 0 : index
    %c0_2 = arith.constant 0 : index
    %2 = vector.load %arg2[%c0_1, %c0_2] : memref<32x128xbf16, #tpu.memory_space<vmem>>, vector<32x128xbf16>
    %cst = arith.constant dense<0.000000e+00> : vector<16x128xf32>
    %3 = tpu.matmul %1, %2, %cst {dimension_numbers = #tpu.dot_dimension_numbers<[1], [0], [0], [1], [0, 0, 1, 1], [], []>} : vector<16x32xbf16>, vector<32x128xbf16>, vector<16x128xf32> -> vector<16x128xf32>
    %c0_3 = arith.constant 0 : index
    %c0_4 = arith.constant 0 : index
    %4 = vector.load %arg3[%c0_3, %c0_4] : memref<1x128xf32, #tpu.memory_space<vmem>>, vector<1x128xf32>
    %5 = vector.broadcast %4 : vector<1x128xf32> to vector<16x128xf32>
    %6 = arith.addf %3, %5 : vector<16x128xf32>
    %cst_5 = arith.constant 0.000000e+00 : f32
    %7 = vector.broadcast %cst_5 : f32 to vector<16x128xf32>
    %8 = arith.maximumf %6, %7 : vector<16x128xf32>
    %9 = arith.truncf %8 : vector<16x128xf32> to vector<16x128xbf16>
    %c0_6 = arith.constant 0 : index
    %c0_7 = arith.constant 0 : index
    %10 = vector.load %arg4[%c0_6, %c0_7] : memref<128x128xbf16, #tpu.memory_space<vmem>>, vector<128x128xbf16>
    %cst_8 = arith.constant dense<0.000000e+00> : vector<16x128xf32>
    %11 = tpu.matmul %9, %10, %cst_8 {dimension_numbers = #tpu.dot_dimension_numbers<[1], [0], [0], [1], [0, 0, 1, 1], [], []>} : vector<16x128xbf16>, vector<128x128xbf16>, vector<16x128xf32> -> vector<16x128xf32>
    %12 = vector.extract_strided_slice %11 {offsets = [0, 0], sizes = [16, 1], strides = [1, 1]} : vector<16x128xf32> to vector<16x1xf32>
    %c0_9 = arith.constant 0 : index
    %c0_10 = arith.constant 0 : index
    %13 = vector.load %arg5[%c0_9, %c0_10] : memref<1x1xf32, #tpu.memory_space<vmem>>, vector<1x1xf32>
    %14 = vector.broadcast %13 : vector<1x1xf32> to vector<16x1xf32>
    %15 = arith.addf %12, %14 : vector<16x1xf32>
    %c0_11 = arith.constant 0 : index
    %c0_12 = arith.constant 0 : index
    %16 = vector.load %arg6[%c0_11, %c0_12] : memref<16x1xf32, #tpu.memory_space<vmem>>, vector<16x1xf32>
    tpu.vector_store %arg6[%c0_11, %c0_12], %15 {strides = array<i32>} : memref<16x1xf32, #tpu.memory_space<vmem>>, vector<16x1xf32>,
    return
  }
  func.func @transform_0(%arg0: i32) -> (i32, i32) {
    %c0_i32 = arith.constant 0 : i32
    %c0_i32_0 = arith.constant 0 : i32
    return %arg0, %c0_i32 : i32, i32
  }
  func.func @transform_1(%arg0: i32) -> (i32, i32) {
    %c0_i32 = arith.constant 0 : i32
    %c0_i32_0 = arith.constant 0 : i32
    %c0_i32_1 = arith.constant 0 : i32
    return %c0_i32, %c0_i32_0 : i32, i32
  }
  func.func @transform_2(%arg0: i32) -> (i32, i32) {
    %c0_i32 = arith.constant 0 : i32
    %c0_i32_0 = arith.constant 0 : i32
    %c0_i32_1 = arith.constant 0 : i32
    return %c0_i32, %c0_i32_0 : i32, i32
  }
  func.func @transform_3(%arg0: i32) -> (i32, i32) {
    %c0_i32 = arith.constant 0 : i32
    %c0_i32_0 = arith.constant 0 : i32
    %c0_i32_1 = arith.constant 0 : i32
    return %c0_i32, %c0_i32_0 : i32, i32
  }
  func.func @transform_4(%arg0: i32) -> (i32, i32) {
    %c0_i32 = arith.constant 0 : i32
    %c0_i32_0 = arith.constant 0 : i32
    %c0_i32_1 = arith.constant 0 : i32
    return %c0_i32, %c0_i32_0 : i32, i32
  }
  func.func @transform_5(%arg0: i32) -> (i32, i32) {
    %c0_i32 = arith.constant 0 : i32
    %c0_i32_0 = arith.constant 0 : i32
    return %arg0, %c0_i32 : i32, i32
  }
}

</mosaic_0001>

<llo_original>
// kernel: mlp_classifier_forward.1
$region0: #{mlp_classifier_forward.1}
  #allocation0 [shape = 'u32[]', space=smem, size = 0x4, offset = 0x4, fixed_abs, tag = 'smem constant byte address 0x4 - core index']
  #allocation1 [shape = 'u32[144,128]{1,0:T(1,128)}', space=vmem, size = 0x12000, scoped, tag = 'internal scratch']
  #allocation2 [shape = 'f32[1,1]{1,0:T(1,128)S(1)}', space=vmem, size = 0x200, scoped, tag = 'scoped memory for mlp_classifier_forward.1']
  %s0 = inlined_call_operand.vmem [shape: f32[16,32], index: 0, kind: input, shape index: {}]
  %s1 = inlined_call_operand.vmem [shape: bf16[32,128], index: 1, kind: input, shape index: {}]
  %s2 = inlined_call_operand.vmem [shape: f32[1,128], index: 2, kind: input, shape index: {}]
  %s3 = inlined_call_operand.hbm [shape: bf16[128,128], index: 3, kind: input, shape index: {}]
  %s4 = inlined_call_operand.<no memory space> [shape: f32[1,1], index: 4, kind: input, shape index: {}]
  %s5 = inlined_call_operand.vmem [shape: f32[16,1], index: 5, kind: output, shape index: {}]
  %s6 = sld [smem:[#allocation0]]
  $region34: #{mlp_classifier_forward.1} parent=0
    _
  %s8 = ssub.s32 1, %s6
  %s9 = scalar_select 0, %s8, %s6
  %v10 = vstv %s4
  %11 = vst [vmem:[#allocation2] sm:$0x1] %v10
  $region1: #{mlp_classifier_forward.1} parent=0
    #allocation3 [shape = 'u8[32768]{0}', space=vmem, size = 0x8000, scoped, tag = 'input window, operand 3, single buffered']
    #allocation4 [shape = 's32[1]{0}', space=sflag, size = 0x4, scoped, tag = 'scoped memory for mlp_classifier_forward.1']
    %12 = vsyncpa [#allocation4], 0
    // Predicated region
    $region2: #{mlp_classifier_forward.1} parent=1 // pred_check
      _
    $region3: #{mlp_classifier_forward.1} parent=1 // pred_check_branch
      %14 = sbr.rel (0) target = $region5
    $region4: #{mlp_classifier_forward.1} parent=1 // pred_region
      _
    $region5: #{mlp_classifier_forward.1} parent=1 // pred_fallthru
      _
    // Predicated region
    $region6: #{mlp_classifier_forward.1} parent=1 // pred_check
      _
    $region7: #{mlp_classifier_forward.1} parent=1 // pred_check_branch
      %16 = sbr.rel (0) target = $region9
    $region8: #{mlp_classifier_forward.1} parent=1 // pred_region
      _
    $region9: #{mlp_classifier_forward.1} parent=1 // pred_fallthru
      _
    // Predicated region
    $region10: #{mlp_classifier_forward.1} parent=1 // pred_check
      _
    $region11: #{mlp_classifier_forward.1} parent=1 // pred_check_branch
      %18 = sbr.rel (0) target = $region13
    $region12: #{mlp_classifier_forward.1} parent=1 // pred_region
      _
    $region13: #{mlp_classifier_forward.1} parent=1 // pred_fallthru
      _
    // Predicated region
    $region14: #{mlp_classifier_forward.1} parent=1 // pred_check
      _
    $region15: #{mlp_classifier_forward.1} parent=1 // pred_check_branch
      %20 = sbr.rel (0) target = $region17
    $region16: #{mlp_classifier_forward.1} parent=1 // pred_region
      %s22 = ssub.s32 1024, 1024
      %23 = vsyncadd [#allocation4], %s22
      %s24 = sshll.u32 [#allocation3], 4
      %s25 = int_to_ptr.vmem [resolvable:$true] %s24
      %30 = dma.hbm_to_vmem [thread:$0]  %s3, 1024, %s25, [#allocation4], 64, 64, 4
    $region17: #{mlp_classifier_forward.1} parent=1 // pred_fallthru
      _
    // Predicated region
    $region18: #{mlp_classifier_forward.1} parent=1 // pred_check
      _
    $region19: #{mlp_classifier_forward.1} parent=1 // pred_check_branch
      %32 = sbr.rel (0) target = $region21
    $region20: #{mlp_classifier_forward.1} parent=1 // pred_region
      _
    $region21: #{mlp_classifier_forward.1} parent=1 // pred_fallthru
      _
    // Predicated region
    $region22: #{mlp_classifier_forward.1} parent=1 // pred_check
      _
    $region23: #{mlp_classifier_forward.1} parent=1 // pred_check_branch
      %34 = sbr.rel (0) target = $region25
    $region24: #{mlp_classifier_forward.1} parent=1 // pred_region
      %35 = dma.done [#allocation4], 1024
    $region25: #{mlp_classifier_forward.1} parent=1 // pred_fallthru
      _
    %v37 = vld [vmem:[%s0] sm:$0xff]
    %v38 = vld [vmem:[%s0 + $0x8] sm:$0xff]
    %v39 = vpack.c.bf16 %v38, %v37
    %v40 = vld [vmem:[%s1] sm:$0xf]
    %v41 = vld [vmem:[%s1 + $0x4] sm:$0xf]
    %v42 = vld [vmem:[%s1 + $0x8] sm:$0xf]
    %v43 = vld [vmem:[%s1 + $0xc] sm:$0xf]
    %v44 = vld [vmem:[%s2] sm:$0x1]
    %v46 = vlaneseq
    %v47 = vshrl.u32 %v46, 7
    %v48 = vsub.s32 0, %v47
    %v49 = vrot.slane %v44, %v48
    %v55 = vunpack.c.l.b16 %v40
    %v56 = vunpack.c.l.b16 %v41
    %v57 = vunpack.c.l.b16 %v42
    %v58 = vunpack.c.l.b16 %v43
    %v59 = vpack.c.b16 %v56, %v55
    %v60 = vpack.c.b16 %v58, %v57
    %vm63 = vcmask 261120
    %v65 = vsel %vm63, %v39, 0
    %67 = vmatprep.subr.bf16.mxu0 0
    %68 = vmatpush1.bf16.msra.mxu0 %v59
    %69 = vmatprep.subr.bf16.mxu0 0
    %70 = vmatpush1.bf16.msra.mxu0 %v60
    %71 = vmatprep.subr.bf16.mxu0 0
    %72 = vmatpush1.bf16.msra.mxu0 0
    %73 = vmatprep.subr.bf16.mxu0 0
    %74 = vmatpush1.bf16.msra.mxu0 0
    %75 = vmatprep.subr.bf16.mxu0 0
    %76 = vmatpush1.bf16.msra.mxu0 0
    %77 = vmatprep.subr.bf16.mxu0 0
    %78 = vmatpush1.bf16.msra.mxu0 0
    %79 = vmatprep.subr.bf16.mxu0 0
    %80 = vmatpush1.bf16.msra.mxu0 0
    %81 = vmatprep.subr.bf16.mxu0 0
    %82 = vmatpush1.bf16.msra.mxu0 0
    %83 = vmatprep.subr.bf16.mxu0 0
    %84 = vmatpush1.bf16.msra.mxu0 0
    %85 = vmatprep.subr.bf16.mxu0 0
    %86 = vmatpush1.bf16.msra.mxu0 0
    %87 = vmatprep.subr.bf16.mxu0 0
    %88 = vmatpush1.bf16.msra.mxu0 0
    %89 = vmatprep.subr.bf16.mxu0 0
    %90 = vmatpush1.bf16.msra.mxu0 0
    %91 = vmatprep.subr.bf16.mxu0 0
    %92 = vmatpush1.bf16.msra.mxu0 0
    %93 = vmatprep.subr.bf16.mxu0 0
    %94 = vmatpush1.bf16.msra.mxu0 0
    %95 = vmatprep.subr.bf16.mxu0 0
    %96 = vmatpush1.bf16.msra.mxu0 0
    %97 = vmatprep.subr.bf16.mxu0 0
    %98 = vmatpush1.bf16.msra.mxu0 0
    %99 = vmatprep.mubr.bf16.mxu0 0
    %100 = vmatmul.mubr.bf16.gmra.mrb[0].mxu0 %v65
    %v101 = vpop.f32.mrb[0].mxu0
    %v102 = vadd.f32 %v49, %v101
    %v103 = vpop.f32.mrb[0].mxu0
    %v104 = vpop.f32.mrb[0].mxu0
    %v105 = vadd.f32 %v49, %v104
    %v106 = vpop.f32.mrb[0].mxu0
    %107 = vdwg.mxu0
    %v108 = vmax.f32 %v102, 0.0
    %v109 = vmax.f32 %v105, 0.0
    %v110 = vpack.c.bf16 %v109, %v108
    %v111 = vld [vmem:[#allocation3] sm:$0xf]
    %v112 = vld [vmem:[#allocation3 + $0x4] sm:$0xf]
    %v113 = vld [vmem:[#allocation3 + $0x8] sm:$0xf]
    %v114 = vld [vmem:[#allocation3 + $0xc] sm:$0xf]
    %v115 = vld [vmem:[#allocation3 + $0x10] sm:$0xf]
    %v116 = vld [vmem:[#allocation3 + $0x14] sm:$0xf]
    %v117 = vld [vmem:[#allocation3 + $0x18] sm:$0xf]
    %v118 = vld [vmem:[#allocation3 + $0x1c] sm:$0xf]
    %v119 = vld [vmem:[#allocation3 + $0x20] sm:$0xf]
    %v120 = vld [vmem:[#allocation3 + $0x24] sm:$0xf]
    %v121 = vld [vmem:[#allocation3 + $0x28] sm:$0xf]
    %v122 = vld [vmem:[#allocation3 + $0x2c] sm:$0xf]
    %v123 = vld [vmem:[#allocation3 + $0x30] sm:$0xf]
    %v124 = vld [vmem:[#allocation3 + $0x34] sm:$0xf]
    %v125 = vld [vmem:[#allocation3 + $0x38] sm:$0xf]
    %v126 = vld [vmem:[#allocation3 + $0x3c] sm:$0xf]
    %v143 = vunpack.c.l.b16 %v111
    %v144 = vunpack.c.l.b16 %v112
    %v145 = vunpack.c.l.b16 %v113
    %v146 = vunpack.c.l.b16 %v114
    %v147 = vunpack.c.l.b16 %v115
    %v148 = vunpack.c.l.b16 %v116
    %v149 = vunpack.c.l.b16 %v117
    %v150 = vunpack.c.l.b16 %v118
    %v151 = vunpack.c.l.b16 %v119
    %v152 = vunpack.c.l.b16 %v120
    %v153 = vunpack.c.l.b16 %v121
    %v154 = vunpack.c.l.b16 %v122
    %v155 = vunpack.c.l.b16 %v123
    %v156 = vunpack.c.l.b16 %v124
    %v157 = vunpack.c.l.b16 %v125
    %v158 = vunpack.c.l.b16 %v126
    %v159 = vpack.c.b16 %v144, %v143
    %v160 = vpack.c.b16 %v146, %v145
    %v161 = vpack.c.b16 %v148, %v147
    %v162 = vpack.c.b16 %v150, %v149
    %v163 = vpack.c.b16 %v152, %v151
    %v164 = vpack.c.b16 %v154, %v153
    %v165 = vpack.c.b16 %v156, %v155
    %v166 = vpack.c.b16 %v158, %v157
    %175 = vmatprep.subr.bf16.mxu0 0
    %176 = vmatpush1.bf16.msra.mxu0 %v159
    %177 = vmatprep.subr.bf16.mxu0 0
    %178 = vmatpush1.bf16.msra.mxu0 %v160
    %179 = vmatprep.subr.bf16.mxu0 0
    %180 = vmatpush1.bf16.msra.mxu0 %v161
    %181 = vmatprep.subr.bf16.mxu0 0
    %182 = vmatpush1.bf16.msra.mxu0 %v162
    %183 = vmatprep.subr.bf16.mxu0 0
    %184 = vmatpush1.bf16.msra.mxu0 %v163
    %185 = vmatprep.subr.bf16.mxu0 0
    %186 = vmatpush1.bf16.msra.mxu0 %v164
    %187 = vmatprep.subr.bf16.mxu0 0
    %188 = vmatpush1.bf16.msra.mxu0 %v165
    %189 = vmatprep.subr.bf16.mxu0 0
    %190 = vmatpush1.bf16.msra.mxu0 %v166
    %191 = vmatprep.subr.bf16.mxu0 0
    %192 = vmatpush1.bf16.msra.mxu0 0
    %193 = vmatprep.subr.bf16.mxu0 0
    %194 = vmatpush1.bf16.msra.mxu0 0
    %195 = vmatprep.subr.bf16.mxu0 0
    %196 = vmatpush1.bf16.msra.mxu0 0
    %197 = vmatprep.subr.bf16.mxu0 0
    %198 = vmatpush1.bf16.msra.mxu0 0
    %199 = vmatprep.subr.bf16.mxu0 0
    %200 = vmatpush1.bf16.msra.mxu0 0
    %201 = vmatprep.subr.bf16.mxu0 0
    %202 = vmatpush1.bf16.msra.mxu0 0
    %203 = vmatprep.subr.bf16.mxu0 0
    %204 = vmatpush1.bf16.msra.mxu0 0
    %205 = vmatprep.subr.bf16.mxu0 0
    %206 = vmatpush1.bf16.msra.mxu0 0
    %207 = vmatprep.mubr.bf16.mxu0 0
    %208 = vmatmul.mubr.bf16.gmra.mrb[0].mxu0 %v110
    %v209 = vpop.f32.mrb[0].mxu0
    %v210 = vadd.f32 0.0, %v209
    %v211 = vpop.f32.mrb[0].mxu0
    %v212 = vpop.f32.mrb[0].mxu0
    %v213 = vadd.f32 0.0, %v212
    %v214 = vpop.f32.mrb[0].mxu0
    %215 = vdwg.mxu0
    %v216 = vld [vmem:[#allocation2] sm:$0x1]
    %v218 = vlaneseq
    %v219 = vshrl.u32 %v218, 7
    %v220 = vsub.s32 0, %v219
    %v221 = vrot.slane %v216, %v220
    %v223 = vadd.f32 %v210, %v221
    %v224 = vadd.f32 %v213, %v221
    %vm225 = vcmask 7168
    %226 = vst.msk [vmem:[%s5] sm:$0xff] %vm225, %v223
    %227 = vst.msk [vmem:[%s5 + $0x8] sm:$0xff] %vm225, %v224
    // Predicated region
    $region26: #{mlp_classifier_forward.1} parent=1 // pred_check
      _
    $region27: #{mlp_classifier_forward.1} parent=1 // pred_check_branch
      %229 = sbr.rel (0) target = $region29
    $region28: #{mlp_classifier_forward.1} parent=1 // pred_region
      _
    $region29: #{mlp_classifier_forward.1} parent=1 // pred_fallthru
      _
    // Predicated region
    $region30: #{mlp_classifier_forward.1} parent=1 // pred_check
      _
    $region31: #{mlp_classifier_forward.1} parent=1 // pred_check_branch
      %231 = sbr.rel (0) target = $region33
    $region32: #{mlp_classifier_forward.1} parent=1 // pred_region
      _
    $region33: #{mlp_classifier_forward.1} parent=1 // pred_fallthru
      _
    %232 = vsyncpa [#allocation4], 1

// kernel: mlp_classifier_forward.1
$region0: #{mlp_classifier_forward.1}
  #allocation0 [shape = 'u32[]', space=smem, size = 0x4, offset = 0x4, fixed_abs, tag = 'smem constant byte address 0x4 - core index']
  #allocation1 [shape = 'u32[144,128]{1,0:T(1,128)}', space=vmem, size = 0x12000, scoped, tag = 'internal scratch']
  #allocation2 [shape = 'f32[1,1]{1,0:T(1,128)S(1)}', space=vmem, size = 0x200, scoped, tag = 'scoped memory for mlp_classifier_forward.1']
  %s0 = inlined_call_operand.vmem [shape: f32[16,32], index: 0, kind: input, shape index: {}]
  %s1 = inlined_call_operand.vmem [shape: bf16[32,128], index: 1, kind: input, shape index: {}]
  %s2 = inlined_call_operand.vmem [shape: f32[1,128], index: 2, kind: input, shape index: {}]
  %s3 = inlined_call_operand.hbm [shape: bf16[128,128], index: 3, kind: input, shape index: {}]
  %s4 = inlined_call_operand.<no memory space> [shape: f32[1,1], index: 4, kind: input, shape index: {}]
  %s5 = inlined_call_operand.vmem [shape: f32[16,1], index: 5, kind: output, shape index: {}]
  %s6 = sld [smem:[#allocation0]]
  $region34: #{mlp_classifier_forward.1} parent=0
    _
  %s8 = ssub.s32 1, %s6
  %s9 = scalar_select 0, %s8, %s6
  %v10 = vstv %s4
  %11 = vst [vmem:[#allocation2] sm:$0x1] %v10
  $region1: #{mlp_classifier_forward.1} parent=0
    #allocation3 [shape = 'u8[32768]{0}', space=vmem, size = 0x8000, scoped, tag = 'input window, operand 3, single buffered']
    #allocation4 [shape = 's32[1]{0}', space=sflag, size = 0x4, scoped, tag = 'scoped memory for mlp_classifier_forward.1']
    %12 = vsyncpa [#allocation4], 0
    // Predicated region
    $region2: #{mlp_classifier_forward.1} parent=1 // pred_check
      _
    $region3: #{mlp_classifier_forward.1} parent=1 // pred_check_branch
      %14 = sbr.rel (0) target = $region5
    $region4: #{mlp_classifier_forward.1} parent=1 // pred_region
      _
    $region5: #{mlp_classifier_forward.1} parent=1 // pred_fallthru
      _
    // Predicated region
    $region6: #{mlp_classifier_forward.1} parent=1 // pred_check
      _
    $region7: #{mlp_classifier_forward.1} parent=1 // pred_check_branch
      %16 = sbr.rel (0) target = $region9
    $region8: #{mlp_classifier_forward.1} parent=1 // pred_region
      _
    $region9: #{mlp_classifier_forward.1} parent=1 // pred_fallthru
      _
    // Predicated region
    $region10: #{mlp_classifier_forward.1} parent=1 // pred_check
      _
    $region11: #{mlp_classifier_forward.1} parent=1 // pred_check_branch
      %18 = sbr.rel (0) target = $region13
    $region12: #{mlp_classifier_forward.1} parent=1 // pred_region
      _
    $region13: #{mlp_classifier_forward.1} parent=1 // pred_fallthru
      _
    // Predicated region
    $region14: #{mlp_classifier_forward.1} parent=1 // pred_check
      _
    $region15: #{mlp_classifier_forward.1} parent=1 // pred_check_branch
      %20 = sbr.rel (0) target = $region17
    $region16: #{mlp_classifier_forward.1} parent=1 // pred_region
      %s22 = ssub.s32 1024, 1024
      %23 = vsyncadd [#allocation4], %s22
      %s24 = sshll.u32 [#allocation3], 4
      %s25 = int_to_ptr.vmem [resolvable:$true] %s24
      %30 = dma.hbm_to_vmem [thread:$0]  %s3, 1024, %s25, [#allocation4], 64, 64, 4
    $region17: #{mlp_classifier_forward.1} parent=1 // pred_fallthru
      _
    // Predicated region
    $region18: #{mlp_classifier_forward.1} parent=1 // pred_check
      _
    $region19: #{mlp_classifier_forward.1} parent=1 // pred_check_branch
      %32 = sbr.rel (0) target = $region21
    $region20: #{mlp_classifier_forward.1} parent=1 // pred_region
      _
    $region21: #{mlp_classifier_forward.1} parent=1 // pred_fallthru
      _
    // Predicated region
    $region22: #{mlp_classifier_forward.1} parent=1 // pred_check
      _
    $region23: #{mlp_classifier_forward.1} parent=1 // pred_check_branch
      %34 = sbr.rel (0) target = $region25
    $region24: #{mlp_classifier_forward.1} parent=1 // pred_region
      %35 = dma.done [#allocation4], 1024
    $region25: #{mlp_classifier_forward.1} parent=1 // pred_fallthru
      _
    %v37 = vld [vmem:[%s0] sm:$0xff]
    %v38 = vld [vmem:[%s0 + $0x8] sm:$0xff]
    %v39 = vpack.c.bf16 %v38, %v37
    %v40 = vld [vmem:[%s1] sm:$0xf]
    %v41 = vld [vmem:[%s1 + $0x4] sm:$0xf]
    %v42 = vld [vmem:[%s1 + $0x8] sm:$0xf]
    %v43 = vld [vmem:[%s1 + $0xc] sm:$0xf]
    %v44 = vld [vmem:[%s2] sm:$0x1]
    %v46 = vlaneseq
    %v47 = vshrl.u32 %v46, 7
    %v48 = vsub.s32 0, %v47
    %v49 = vrot.slane %v44, %v48
    %v55 = vunpack.c.l.b16 %v40
    %v56 = vunpack.c.l.b16 %v41
    %v57 = vunpack.c.l.b16 %v42
    %v58 = vunpack.c.l.b16 %v43
    %v59 = vpack.c.b16 %v56, %v55
    %v60 = vpack.c.b16 %v58, %v57
    %vm63 = vcmask 261120
    %v65 = vsel %vm63, %v39, 0
    %67 = vmatprep.subr.bf16.mxu0 0
    %68 = vmatpush1.bf16.msra.mxu0 %v59
    %69 = vmatprep.subr.bf16.mxu0 0
    %70 = vmatpush1.bf16.msra.mxu0 %v60
    %71 = vmatprep.subr.bf16.mxu0 0
    %72 = vmatpush1.bf16.msra.mxu0 0
    %73 = vmatprep.subr.bf16.mxu0 0
    %74 = vmatpush1.bf16.msra.mxu0 0
    %75 = vmatprep.subr.bf16.mxu0 0
    %76 = vmatpush1.bf16.msra.mxu0 0
    %77 = vmatprep.subr.bf16.mxu0 0
    %78 = vmatpush1.bf16.msra.mxu0 0
    %79 = vmatprep.subr.bf16.mxu0 0
    %80 = vmatpush1.bf16.msra.mxu0 0
    %81 = vmatprep.subr.bf16.mxu0 0
    %82 = vmatpush1.bf16.msra.mxu0 0
    %83 = vmatprep.subr.bf16.mxu0 0
    %84 = vmatpush1.bf16.msra.mxu0 0
    %85 = vmatprep.subr.bf16.mxu0 0
    %86 = vmatpush1.bf16.msra.mxu0 0
    %87 = vmatprep.subr.bf16.mxu0 0
    %88 = vmatpush1.bf16.msra.mxu0 0
    %89 = vmatprep.subr.bf16.mxu0 0
    %90 = vmatpush1.bf16.msra.mxu0 0
    %91 = vmatprep.subr.bf16.mxu0 0
    %92 = vmatpush1.bf16.msra.mxu0 0
    %93 = vmatprep.subr.bf16.mxu0 0
    %94 = vmatpush1.bf16.msra.mxu0 0
    %95 = vmatprep.subr.bf16.mxu0 0
    %96 = vmatpush1.bf16.msra.mxu0 0
    %97 = vmatprep.subr.bf16.mxu0 0
    %98 = vmatpush1.bf16.msra.mxu0 0
    %99 = vmatprep.mubr.bf16.mxu0 0
    %100 = vmatmul.mubr.bf16.gmra.mrb[0].mxu0 %v65
    %v101 = vpop.f32.mrb[0].mxu0
    %v102 = vadd.f32 %v49, %v101
    %v103 = vpop.f32.mrb[0].mxu0
    %v104 = vpop.f32.mrb[0].mxu0
    %v105 = vadd.f32 %v49, %v104
    %v106 = vpop.f32.mrb[0].mxu0
    %107 = vdwg.mxu0
    %v108 = vmax.f32 %v102, 0.0
    %v109 = vmax.f32 %v105, 0.0
    %v110 = vpack.c.bf16 %v109, %v108
    %v111 = vld [vmem:[#allocation3] sm:$0xf]
    %v112 = vld [vmem:[#allocation3 + $0x4] sm:$0xf]
    %v113 = vld [vmem:[#allocation3 + $0x8] sm:$0xf]
    %v114 = vld [vmem:[#allocation3 + $0xc] sm:$0xf]
    %v115 = vld [vmem:[#allocation3 + $0x10] sm:$0xf]
    %v116 = vld [vmem:[#allocation3 + $0x14] sm:$0xf]
    %v117 = vld [vmem:[#allocation3 + $0x18] sm:$0xf]
    %v118 = vld [vmem:[#allocation3 + $0x1c] sm:$0xf]
    %v119 = vld [vmem:[#allocation3 + $0x20] sm:$0xf]
    %v120 = vld [vmem:[#allocation3 + $0x24] sm:$0xf]
    %v121 = vld [vmem:[#allocation3 + $0x28] sm:$0xf]
    %v122 = vld [vmem:[#allocation3 + $0x2c] sm:$0xf]
    %v123 = vld [vmem:[#allocation3 + $0x30] sm:$0xf]
    %v124 = vld [vmem:[#allocation3 + $0x34] sm:$0xf]
    %v125 = vld [vmem:[#allocation3 + $0x38] sm:$0xf]
    %v126 = vld [vmem:[#allocation3 + $0x3c] sm:$0xf]
    %v143 = vunpack.c.l.b16 %v111
    %v144 = vunpack.c.l.b16 %v112
    %v145 = vunpack.c.l.b16 %v113
    %v146 = vunpack.c.l.b16 %v114
    %v147 = vunpack.c.l.b16 %v115
    %v148 = vunpack.c.l.b16 %v116
    %v149 = vunpack.c.l.b16 %v117
    %v150 = vunpack.c.l.b16 %v118
    %v151 = vunpack.c.l.b16 %v119
    %v152 = vunpack.c.l.b16 %v120
    %v153 = vunpack.c.l.b16 %v121
    %v154 = vunpack.c.l.b16 %v122
    %v155 = vunpack.c.l.b16 %v123
    %v156 = vunpack.c.l.b16 %v124
    %v157 = vunpack.c.l.b16 %v125
    %v158 = vunpack.c.l.b16 %v126
    %v159 = vpack.c.b16 %v144, %v143
    %v160 = vpack.c.b16 %v146, %v145
    %v161 = vpack.c.b16 %v148, %v147
    %v162 = vpack.c.b16 %v150, %v149
    %v163 = vpack.c.b16 %v152, %v151
    %v164 = vpack.c.b16 %v154, %v153
    %v165 = vpack.c.b16 %v156, %v155
    %v166 = vpack.c.b16 %v158, %v157
    %175 = vmatprep.subr.bf16.mxu0 0
    %176 = vmatpush1.bf16.msra.mxu0 %v159
    %177 = vmatprep.subr.bf16.mxu0 0
    %178 = vmatpush1.bf16.msra.mxu0 %v160
    %179 = vmatprep.subr.bf16.mxu0 0
    %180 = vmatpush1.bf16.msra.mxu0 %v161
    %181 = vmatprep.subr.bf16.mxu0 0
    %182 = vmatpush1.bf16.msra.mxu0 %v162
    %183 = vmatprep.subr.bf16.mxu0 0
    %184 = vmatpush1.bf16.msra.mxu0 %v163
    %185 = vmatprep.subr.bf16.mxu0 0
    %186 = vmatpush1.bf16.msra.mxu0 %v164
    %187 = vmatprep.subr.bf16.mxu0 0
    %188 = vmatpush1.bf16.msra.mxu0 %v165
    %189 = vmatprep.subr.bf16.mxu0 0
    %190 = vmatpush1.bf16.msra.mxu0 %v166
    %191 = vmatprep.subr.bf16.mxu0 0
    %192 = vmatpush1.bf16.msra.mxu0 0
    %193 = vmatprep.subr.bf16.mxu0 0
    %194 = vmatpush1.bf16.msra.mxu0 0
    %195 = vmatprep.subr.bf16.mxu0 0
    %196 = vmatpush1.bf16.msra.mxu0 0
    %197 = vmatprep.subr.bf16.mxu0 0
    %198 = vmatpush1.bf16.msra.mxu0 0
    %199 = vmatprep.subr.bf16.mxu0 0
    %200 = vmatpush1.bf16.msra.mxu0 0
    %201 = vmatprep.subr.bf16.mxu0 0
    %202 = vmatpush1.bf16.msra.mxu0 0
    %203 = vmatprep.subr.bf16.mxu0 0
    %204 = vmatpush1.bf16.msra.mxu0 0
    %205 = vmatprep.subr.bf16.mxu0 0
    %206 = vmatpush1.bf16.msra.mxu0 0
    %207 = vmatprep.mubr.bf16.mxu0 0
    %208 = vmatmul.mubr.bf16.gmra.mrb[0].mxu0 %v110
    %v209 = vpop.f32.mrb[0].mxu0
    %v210 = vadd.f32 0.0, %v209
    %v211 = vpop.f32.mrb[0].mxu0
    %v212 = vpop.f32.mrb[0].mxu0
    %v213 = vadd.f32 0.0, %v212
    %v214 = vpop.f32.mrb[0].mxu0
    %215 = vdwg.mxu0
    %v216 = vld [vmem:[#allocation2] sm:$0x1]
    %v218 = vlaneseq
    %v219 = vshrl.u32 %v218, 7
    %v220 = vsub.s32 0, %v219
    %v221 = vrot.slane %v216, %v220
    %v223 = vadd.f32 %v210, %v221
    %v224 = vadd.f32 %v213, %v221
    %vm225 = vcmask 7168
    %226 = vst.msk [vmem:[%s5] sm:$0xff] %vm225, %v223
    %227 = vst.msk [vmem:[%s5 + $0x8] sm:$0xff] %vm225, %v224
    // Predicated region
    $region26: #{mlp_classifier_forward.1} parent=1 // pred_check
      _
    $region27: #{mlp_classifier_forward.1} parent=1 // pred_check_branch
      %229 = sbr.rel (0) target = $region29
    $region28: #{mlp_classifier_forward.1} parent=1 // pred_region
      _
    $region29: #{mlp_classifier_forward.1} parent=1 // pred_fallthru
      _
    // Predicated region
    $region30: #{mlp_classifier_forward.1} parent=1 // pred_check
      _
    $region31: #{mlp_classifier_forward.1} parent=1 // pred_check_branch
      %231 = sbr.rel (0) target = $region33
    $region32: #{mlp_classifier_forward.1} parent=1 // pred_region
      _
    $region33: #{mlp_classifier_forward.1} parent=1 // pred_fallthru
      _
    %232 = vsyncpa [#allocation4], 1

</llo_original>
